<compile_context>
chip_gen: v5e
topology: v5e:2x2
jax: 0.10.0
libtpu: 0.0.40
codegen_flags: <defaults>
</compile_context>

<pallas_src>
import jax
import jax.numpy as jnp
from jax.experimental import pallas as pl
from jax.experimental.pallas import tpu as pltpu


def _mlp_kernel(xT_ref, w1_ref, b1_ref, w2_ref, b2_ref, w3_ref, b3_ref, o_ref):
    # Layer 1: W1 @ x^T + b1, ReLU   (bf16 operands, f32 MXU accumulate)
    h = jnp.dot(w1_ref[...], xT_ref[...], preferred_element_type=jnp.float32)
    h = jnp.maximum(h + b1_ref[...], 0.0)                       # [d1, tb], f32
    # Layer 2: W2 @ h + b2, ReLU
    h = jnp.dot(w2_ref[...], h.astype(jnp.bfloat16),
                preferred_element_type=jnp.float32)
    h = jnp.maximum(h + b2_ref[...], 0.0)                       # [d2, tb], f32
    # Output layer: W3 @ h + b3 (no activation) -> lane-dense [dout, tb]
    out = jnp.dot(w3_ref[...], h.astype(jnp.bfloat16),
                  preferred_element_type=jnp.float32) + b3_ref[...]
    o_ref[...] = out.astype(o_ref.dtype)


def _pick_batch_tile(B):
    """Whole batch for small B; otherwise the largest 128-aligned divisor <=512."""
    if B <= 512:
        return B
    for tb in (512, 384, 256, 128):
        if B % tb == 0:
            return tb
    return B  # ragged large batch: fall back to a single grid step


def prediction_head_forward(x, params, *, tb=None):
    """Fused MLP forward. x: [B, d0] -> [B] when output_dim==1, else [B, dout]."""
    w1, b1, w2, b2, w3, b3 = params
    B, d0 = x.shape
    d1, d2, dout = w1.shape[0], w2.shape[0], w3.shape[0]
    assert w1.shape[1] == d0 and w2.shape[1] == d1 and w3.shape[1] == d2

    if tb is None:
        tb = _pick_batch_tile(B)
    assert B % tb == 0, "batch tile must divide the batch"
    assert tb == B or tb % 128 == 0, "partial batch tiles must be lane-aligned"

    # Batch on the lane axis; bf16 matmul operands (biases stay f32).
    xT = x.T.astype(jnp.bfloat16)      # [d0, B]
    w1b = w1.astype(jnp.bfloat16)
    w2b = w2.astype(jnp.bfloat16)
    w3b = w3.astype(jnp.bfloat16)

    grid = (B // tb,)

    outT = pl.pallas_call(
        _mlp_kernel,
        out_shape=jax.ShapeDtypeStruct((dout, B), jnp.float32),
        grid_spec=pltpu.PrefetchScalarGridSpec(
            num_scalar_prefetch=0,
            grid=grid,
            in_specs=[
                pl.BlockSpec((d0, tb), lambda i: (0, i)),    # x^T tile (batch on lanes)
                pl.BlockSpec((d1, d0), lambda i: (0, 0)),    # W1 (VMEM-resident)
                pl.BlockSpec((d1, 1), lambda i: (0, 0)),     # b1
                pl.BlockSpec((d2, d1), lambda i: (0, 0)),    # W2
                pl.BlockSpec((d2, 1), lambda i: (0, 0)),     # b2
                pl.BlockSpec((dout, d2), lambda i: (0, 0)),  # W3
                pl.BlockSpec((dout, 1), lambda i: (0, 0)),   # b3
            ],
            out_specs=pl.BlockSpec((dout, tb), lambda i: (0, i)),
        ),
        compiler_params=pltpu.CompilerParams(
            dimension_semantics=("parallel",),   # megacore sharding on v7x
        ),
    )(xT, w1b, b1, w2b, b2, w3b, b3)

    if dout == 1:
        return outT[0]     # squeeze(-1): [B]
    return outT.T          # torch squeeze(-1) is a no-op when dout > 1


def init_params(key, hidden_dims, output_dim):
    """Deterministic synthetic parameters in PyTorch layout: W [out, in], b [out, 1]."""
    dims = list(hidden_dims) + [output_dim]
    keys = jax.random.split(key, 2 * (len(dims) - 1))
    params = []
    for li in range(len(dims) - 1):
        fan_in, fan_out = dims[li], dims[li + 1]
        bound = 1.0 / jnp.sqrt(fan_in)
        w = jax.random.uniform(keys[2 * li], (fan_out, fan_in),
                               minval=-bound, maxval=bound, dtype=jnp.float32)
        b = jax.random.uniform(keys[2 * li + 1], (fan_out, 1),
                               minval=-bound, maxval=bound, dtype=jnp.float32)
        params.extend([w, b])
    return tuple(params)


def prediction_head_ref(x, params):
    """Pure-JAX f32 reference (same semantics as the PyTorch module in eval mode)."""
    w1, b1, w2, b2, w3, b3 = params
    h = jnp.maximum(x @ w1.T + b1[:, 0], 0.0)
    h = jnp.maximum(h @ w2.T + b2[:, 0], 0.0)
    out = h @ w3.T + b3[:, 0]
    return jnp.squeeze(out, axis=-1) if out.shape[-1] == 1 else out


if __name__ == "__main__":
    # config = {'hidden_dims': [32, 64, 32], 'dropout': 0.1, 'output_dim': 1}
    hidden_dims = [32, 64, 32]
    output_dim = 1
    batch = 16

    key = jax.random.PRNGKey(0)
    k_x, k_p = jax.random.split(key)
    x = jax.random.normal(k_x, (batch, hidden_dims[0]), dtype=jnp.float32)
    params = init_params(k_p, hidden_dims, output_dim)

    y = prediction_head_forward(x, params)
    y = jax.block_until_ready(y)

    y_ref = prediction_head_ref(x, params)
    assert y.shape == (batch,), y.shape
    # Kernel uses bf16 matmul operands with f32 accumulation; compare to the
    # full-f32 reference with a correspondingly loose tolerance.
    assert jnp.allclose(y, y_ref, atol=5e-2, rtol=5e-2), "mismatch vs reference"

    print("KERNEL_OK")
</pallas_src>

<mosaic_0001>
module attributes {stable_mosaic.version = 11 : i64} {
  func.func @_mlp_kernel(%arg0: i32, %arg1: memref<32x16xbf16, #tpu.memory_space<vmem>>, %arg2: memref<64x32xbf16, #tpu.memory_space<vmem>>, %arg3: memref<64x1xf32, #tpu.memory_space<vmem>>, %arg4: memref<32x64xbf16, #tpu.memory_space<vmem>>, %arg5: memref<32x1xf32, #tpu.memory_space<vmem>>, %arg6: memref<1x32xbf16, #tpu.memory_space<vmem>>, %arg7: memref<1x1xf32, #tpu.memory_space<vmem>>, %arg8: memref<1x16xf32, #tpu.memory_space<vmem>>) attributes {dimension_semantics = [#tpu.dimension_semantics<parallel>], iteration_bounds = array<i64: 1>, scalar_prefetch = 0 : i64, scratch_operands = 0 : i64, tpu.core_type = #tpu.core_type<tc>, window_params = [{transform_indices = @transform_0, window_bounds = array<i64: 32, 16>}, {pipeline_mode = #tpu.pipeline_mode<synchronous>, transform_indices = @transform_1, window_bounds = array<i64: 64, 32>}, {pipeline_mode = #tpu.pipeline_mode<synchronous>, transform_indices = @transform_2, window_bounds = array<i64: 64, 1>}, {pipeline_mode = #tpu.pipeline_mode<synchronous>, transform_indices = @transform_3, window_bounds = array<i64: 32, 64>}, {pipeline_mode = #tpu.pipeline_mode<synchronous>, transform_indices = @transform_4, window_bounds = array<i64: 32, 1>}, {pipeline_mode = #tpu.pipeline_mode<synchronous>, transform_indices = @transform_5, window_bounds = array<i64: 1, 32>}, {pipeline_mode = #tpu.pipeline_mode<synchronous>, transform_indices = @transform_6, window_bounds = array<i64: 1, 1>}, {transform_indices = @transform_7, window_bounds = array<i64: 1, 16>}]} {
    %c0 = arith.constant 0 : index
    %c0_0 = arith.constant 0 : index
    %0 = vector.load %arg2[%c0, %c0_0] : memref<64x32xbf16, #tpu.memory_space<vmem>>, vector<64x32xbf16>
    %c0_1 = arith.constant 0 : index
    %c0_2 = arith.constant 0 : index
    %1 = vector.load %arg1[%c0_1, %c0_2] : memref<32x16xbf16, #tpu.memory_space<vmem>>, vector<32x16xbf16>
    %cst = arith.constant dense<0.000000e+00> : vector<64x16xf32>
    %2 = tpu.matmul %0, %1, %cst {dimension_numbers = #tpu.dot_dimension_numbers<[1], [0], [0], [1], [0, 0, 1, 1], [], []>} : vector<64x32xbf16>, vector<32x16xbf16>, vector<64x16xf32> -> vector<64x16xf32>
    %c0_3 = arith.constant 0 : index
    %c0_4 = arith.constant 0 : index
    %3 = vector.load %arg3[%c0_3, %c0_4] : memref<64x1xf32, #tpu.memory_space<vmem>>, vector<64x1xf32>
    %4 = vector.broadcast %3 : vector<64x1xf32> to vector<64x16xf32>
    %5 = arith.addf %2, %4 : vector<64x16xf32>
    %cst_5 = arith.constant 0.000000e+00 : f32
    %6 = vector.broadcast %cst_5 : f32 to vector<64x16xf32>
    %7 = arith.maximumf %5, %6 : vector<64x16xf32>
    %c0_6 = arith.constant 0 : index
    %c0_7 = arith.constant 0 : index
    %8 = vector.load %arg4[%c0_6, %c0_7] : memref<32x64xbf16, #tpu.memory_space<vmem>>, vector<32x64xbf16>
    %9 = arith.truncf %7 : vector<64x16xf32> to vector<64x16xbf16>
    %cst_8 = arith.constant dense<0.000000e+00> : vector<32x16xf32>
    %10 = tpu.matmul %8, %9, %cst_8 {dimension_numbers = #tpu.dot_dimension_numbers<[1], [0], [0], [1], [0, 0, 1, 1], [], []>} : vector<32x64xbf16>, vector<64x16xbf16>, vector<32x16xf32> -> vector<32x16xf32>
    %c0_9 = arith.constant 0 : index
    %c0_10 = arith.constant 0 : index
    %11 = vector.load %arg5[%c0_9, %c0_10] : memref<32x1xf32, #tpu.memory_space<vmem>>, vector<32x1xf32>
    %12 = vector.broadcast %11 : vector<32x1xf32> to vector<32x16xf32>
    %13 = arith.addf %10, %12 : vector<32x16xf32>
    %cst_11 = arith.constant 0.000000e+00 : f32
    %14 = vector.broadcast %cst_11 : f32 to vector<32x16xf32>
    %15 = arith.maximumf %13, %14 : vector<32x16xf32>
    %c0_12 = arith.constant 0 : index
    %c0_13 = arith.constant 0 : index
    %16 = vector.load %arg6[%c0_12, %c0_13] : memref<1x32xbf16, #tpu.memory_space<vmem>>, vector<1x32xbf16>
    %17 = arith.truncf %15 : vector<32x16xf32> to vector<32x16xbf16>
    %cst_14 = arith.constant dense<0.000000e+00> : vector<1x16xf32>
    %18 = tpu.matmul %16, %17, %cst_14 {dimension_numbers = #tpu.dot_dimension_numbers<[1], [0], [0], [1], [0, 0, 1, 1], [], []>} : vector<1x32xbf16>, vector<32x16xbf16>, vector<1x16xf32> -> vector<1x16xf32>
    %c0_15 = arith.constant 0 : index
    %c0_16 = arith.constant 0 : index
    %19 = vector.load %arg7[%c0_15, %c0_16] : memref<1x1xf32, #tpu.memory_space<vmem>>, vector<1x1xf32>
    %20 = vector.broadcast %19 : vector<1x1xf32> to vector<1x16xf32>
    %21 = arith.addf %18, %20 : vector<1x16xf32>
    %c0_17 = arith.constant 0 : index
    %c0_18 = arith.constant 0 : index
    %22 = vector.load %arg8[%c0_17, %c0_18] : memref<1x16xf32, #tpu.memory_space<vmem>>, vector<1x16xf32>
    tpu.vector_store %arg8[%c0_17, %c0_18], %21 {strides = array<i32>} : memref<1x16xf32, #tpu.memory_space<vmem>>, vector<1x16xf32>,
    return
  }
  func.func @transform_0(%arg0: i32) -> (i32, i32) {
    %c0_i32 = arith.constant 0 : i32
    %c0_i32_0 = arith.constant 0 : i32
    return %c0_i32, %arg0 : i32, i32
  }
  func.func @transform_1(%arg0: i32) -> (i32, i32) {
    %c0_i32 = arith.constant 0 : i32
    %c0_i32_0 = arith.constant 0 : i32
    %c0_i32_1 = arith.constant 0 : i32
    return %c0_i32, %c0_i32_0 : i32, i32
  }
  func.func @transform_2(%arg0: i32) -> (i32, i32) {
    %c0_i32 = arith.constant 0 : i32
    %c0_i32_0 = arith.constant 0 : i32
    %c0_i32_1 = arith.constant 0 : i32
    return %c0_i32, %c0_i32_0 : i32, i32
  }
  func.func @transform_3(%arg0: i32) -> (i32, i32) {
    %c0_i32 = arith.constant 0 : i32
    %c0_i32_0 = arith.constant 0 : i32
    %c0_i32_1 = arith.constant 0 : i32
    return %c0_i32, %c0_i32_0 : i32, i32
  }
  func.func @transform_4(%arg0: i32) -> (i32, i32) {
    %c0_i32 = arith.constant 0 : i32
    %c0_i32_0 = arith.constant 0 : i32
    %c0_i32_1 = arith.constant 0 : i32
    return %c0_i32, %c0_i32_0 : i32, i32
  }
  func.func @transform_5(%arg0: i32) -> (i32, i32) {
    %c0_i32 = arith.constant 0 : i32
    %c0_i32_0 = arith.constant 0 : i32
    %c0_i32_1 = arith.constant 0 : i32
    return %c0_i32, %c0_i32_0 : i32, i32
  }
  func.func @transform_6(%arg0: i32) -> (i32, i32) {
    %c0_i32 = arith.constant 0 : i32
    %c0_i32_0 = arith.constant 0 : i32
    %c0_i32_1 = arith.constant 0 : i32
    return %c0_i32, %c0_i32_0 : i32, i32
  }
  func.func @transform_7(%arg0: i32) -> (i32, i32) {
    %c0_i32 = arith.constant 0 : i32
    %c0_i32_0 = arith.constant 0 : i32
    return %c0_i32, %arg0 : i32, i32
  }
}

</mosaic_0001>

<llo_original>
// kernel: tpu_custom_call.1
$region0: #{tpu_custom_call.1}
  #allocation0 [shape = 'u32[]', space=smem, size = 0x4, offset = 0x4, fixed_abs, tag = 'smem constant byte address 0x4 - core index']
  #allocation1 [shape = 'u32[72,128]{1,0:T(1,128)}', space=vmem, size = 0x9000, scoped, tag = 'internal scratch']
  #allocation2 [shape = 'f32[1,1]{1,0:T(1,128)S(1)}', space=vmem, size = 0x200, scoped, tag = 'scoped memory for tpu_custom_call.1']
  %s0 = inlined_call_operand.vmem [shape: bf16[32,16], index: 0, kind: input, shape index: {}]
  %s1 = inlined_call_operand.vmem [shape: bf16[64,32], index: 1, kind: input, shape index: {}]
  %s2 = inlined_call_operand.vmem [shape: f32[64,1], index: 2, kind: input, shape index: {}]
  %s3 = inlined_call_operand.vmem [shape: bf16[32,64], index: 3, kind: input, shape index: {}]
  %s4 = inlined_call_operand.vmem [shape: f32[32,1], index: 4, kind: input, shape index: {}]
  %s5 = inlined_call_operand.vmem [shape: bf16[1,32], index: 5, kind: input, shape index: {}]
  %s6 = inlined_call_operand.<no memory space> [shape: f32[1,1], index: 6, kind: input, shape index: {}]
  %s7 = inlined_call_operand.hbm [shape: f32[1,16], index: 7, kind: output, shape index: {}]
  %s8 = sld [smem:[#allocation0]]
  $region38: #{tpu_custom_call.1} parent=0
    _
  %s10 = ssub.s32 1, %s8
  %s11 = scalar_select 0, %s10, %s8
  %v12 = vstv %s6
  %13 = vst [vmem:[#allocation2] sm:$0x1] %v12
  $region1: #{tpu_custom_call.1} parent=0
    #allocation3 [shape = 'u8[512]{0}', space=vmem, size = 0x400, scoped, tag = 'output window, operand 0, single buffered']
    #allocation4 [shape = 's32[1]{0}', space=sflag, size = 0x4, scoped, tag = 'scoped memory for tpu_custom_call.1']
    %14 = vsyncpa [#allocation4], 0
    // Predicated region
    $region2: #{tpu_custom_call.1} parent=1 // pred_check
      _
    $region3: #{tpu_custom_call.1} parent=1 // pred_check_branch
      %16 = sbr.rel (0) target = $region5
    $region4: #{tpu_custom_call.1} parent=1 // pred_region
      _
    $region5: #{tpu_custom_call.1} parent=1 // pred_fallthru
      _
    // Predicated region
    $region6: #{tpu_custom_call.1} parent=1 // pred_check
      _
    $region7: #{tpu_custom_call.1} parent=1 // pred_check_branch
      %18 = sbr.rel (0) target = $region9
    $region8: #{tpu_custom_call.1} parent=1 // pred_region
      _
    $region9: #{tpu_custom_call.1} parent=1 // pred_fallthru
      _
    // Predicated region
    $region10: #{tpu_custom_call.1} parent=1 // pred_check
      _
    $region11: #{tpu_custom_call.1} parent=1 // pred_check_branch
      %20 = sbr.rel (0) target = $region13
    $region12: #{tpu_custom_call.1} parent=1 // pred_region
      _
    $region13: #{tpu_custom_call.1} parent=1 // pred_fallthru
      _
    // Predicated region
    $region14: #{tpu_custom_call.1} parent=1 // pred_check
      _
    $region15: #{tpu_custom_call.1} parent=1 // pred_check_branch
      %22 = sbr.rel (0) target = $region17
    $region16: #{tpu_custom_call.1} parent=1 // pred_region
      _
    $region17: #{tpu_custom_call.1} parent=1 // pred_fallthru
      _
    // Predicated region
    $region18: #{tpu_custom_call.1} parent=1 // pred_check
      _
    $region19: #{tpu_custom_call.1} parent=1 // pred_check_branch
      %24 = sbr.rel (0) target = $region21
    $region20: #{tpu_custom_call.1} parent=1 // pred_region
      _
    $region21: #{tpu_custom_call.1} parent=1 // pred_fallthru
      _
    // Predicated region
    $region22: #{tpu_custom_call.1} parent=1 // pred_check
      _
    $region23: #{tpu_custom_call.1} parent=1 // pred_check_branch
      %26 = sbr.rel (0) target = $region25
    $region24: #{tpu_custom_call.1} parent=1 // pred_region
      _
    $region25: #{tpu_custom_call.1} parent=1 // pred_fallthru
      _
    // Predicated region
    $region26: #{tpu_custom_call.1} parent=1 // pred_check
      _
    $region27: #{tpu_custom_call.1} parent=1 // pred_check_branch
      %28 = sbr.rel (0) target = $region29
    $region28: #{tpu_custom_call.1} parent=1 // pred_region
      _
    $region29: #{tpu_custom_call.1} parent=1 // pred_fallthru
      _
    %v30 = vld [vmem:[%s1] sm:$0xf]
    %v31 = vld [vmem:[%s1 + $0x4] sm:$0xf]
    %v32 = vld [vmem:[%s1 + $0x8] sm:$0xf]
    %v33 = vld [vmem:[%s1 + $0xc] sm:$0xf]
    %v34 = vld [vmem:[%s1 + $0x10] sm:$0xf]
    %v35 = vld [vmem:[%s1 + $0x14] sm:$0xf]
    %v36 = vld [vmem:[%s1 + $0x18] sm:$0xf]
    %v37 = vld [vmem:[%s1 + $0x1c] sm:$0xf]
    %v38 = vld [vmem:[%s0] sm:$0xf]
    %v39 = vld [vmem:[%s0 + $0x4] sm:$0xf]
    %v40 = vld [vmem:[%s0 + $0x8] sm:$0xf]
    %v41 = vld [vmem:[%s0 + $0xc] sm:$0xf]
    %v42 = vld [vmem:[%s2] sm:$0xff]
    %v43 = vld [vmem:[%s2 + $0x8] sm:$0xff]
    %v44 = vld [vmem:[%s2 + $0x10] sm:$0xff]
    %v45 = vld [vmem:[%s2 + $0x18] sm:$0xff]
    %v46 = vld [vmem:[%s2 + $0x20] sm:$0xff]
    %v47 = vld [vmem:[%s2 + $0x28] sm:$0xff]
    %v48 = vld [vmem:[%s2 + $0x30] sm:$0xff]
    %v49 = vld [vmem:[%s2 + $0x38] sm:$0xff]
    %51 = vset.pattern.permute.xlu0 0
    %52 = vperm.xlu0 %51, %v42
    %v53 = vpop.permute.xlu0 %52
    %56 = vset.pattern.permute.xlu0 0
    %57 = vperm.xlu0 %56, %v43
    %v58 = vpop.permute.xlu0 %57
    %61 = vset.pattern.permute.xlu0 0
    %62 = vperm.xlu0 %61, %v44
    %v63 = vpop.permute.xlu0 %62
    %66 = vset.pattern.permute.xlu0 0
    %67 = vperm.xlu0 %66, %v45
    %v68 = vpop.permute.xlu0 %67
    %71 = vset.pattern.permute.xlu0 0
    %72 = vperm.xlu0 %71, %v46
    %v73 = vpop.permute.xlu0 %72
    %76 = vset.pattern.permute.xlu0 0
    %77 = vperm.xlu0 %76, %v47
    %v78 = vpop.permute.xlu0 %77
    %81 = vset.pattern.permute.xlu0 0
    %82 = vperm.xlu0 %81, %v48
    %v83 = vpop.permute.xlu0 %82
    %86 = vset.pattern.permute.xlu0 0
    %87 = vperm.xlu0 %86, %v49
    %v88 = vpop.permute.xlu0 %87
    %v98 = vunpack.c.l.b16 %v30
    %v99 = vunpack.c.l.b16 %v31
    %v100 = vunpack.c.l.b16 %v32
    %v101 = vunpack.c.l.b16 %v33
    %v102 = vunpack.c.l.b16 %v34
    %v103 = vunpack.c.l.b16 %v35
    %v104 = vunpack.c.l.b16 %v36
    %v105 = vunpack.c.l.b16 %v37
    %v106 = vpack.c.b16 %v99, %v98
    %v107 = vpack.c.b16 %v101, %v100
    %v108 = vpack.c.b16 %v103, %v102
    %v109 = vpack.c.b16 %v105, %v104
    %v114 = vunpack.c.l.b16 %v38
    %v115 = vunpack.c.l.b16 %v39
    %v116 = vunpack.c.l.b16 %v40
    %v117 = vunpack.c.l.b16 %v41
    %v118 = vpack.c.b16 %v115, %v114
    %v119 = vpack.c.b16 %v117, %v116
    %vm122 = vcmask 261120
    %v124 = vsel %vm122, %v106, 0
    %v127 = vsel %vm122, %v107, 0
    %v130 = vsel %vm122, %v108, 0
    %v133 = vsel %vm122, %v109, 0
    %135 = vmatpush.bf16.msra.mxu0 0
    %136 = vmatpush.bf16.msra.mxu0 0
    %137 = vmatpush.bf16.msra.mxu0 0
    %138 = vmatpush.bf16.msra.mxu0 0
    %139 = vmatpush.bf16.msra.mxu0 0
    %140 = vmatpush.bf16.msra.mxu0 0
    %141 = vmatpush.bf16.msra.mxu0 %v119
    %142 = vmatpush.bf16.msra.mxu0 %v118
    %143 = vmatmul.bf16.gmra.mxu0 %v124
    %v144 = vpop.f32.mrf.mxu0
    %v145 = vadd.f32 %v53, %v144
    %v146 = vpop.f32.mrf.mxu0
    %v147 = vadd.f32 %v58, %v146
    %148 = vmatmul.bf16.gmra.mxu0 %v127
    %v149 = vpop.f32.mrf.mxu0
    %v150 = vadd.f32 %v63, %v149
    %v151 = vpop.f32.mrf.mxu0
    %v152 = vadd.f32 %v68, %v151
    %153 = vmatmul.bf16.gmra.mxu0 %v130
    %v154 = vpop.f32.mrf.mxu0
    %v155 = vadd.f32 %v73, %v154
    %v156 = vpop.f32.mrf.mxu0
    %v157 = vadd.f32 %v78, %v156
    %158 = vmatmul.bf16.gmra.mxu0 %v133
    %v159 = vpop.f32.mrf.mxu0
    %v160 = vadd.f32 %v83, %v159
    %v161 = vpop.f32.mrf.mxu0
    %v162 = vadd.f32 %v88, %v161
    %163 = vdwg.mxu0
    %v164 = vmax.f32 %v145, 0.0
    %v165 = vmax.f32 %v147, 0.0
    %v166 = vmax.f32 %v150, 0.0
    %v167 = vmax.f32 %v152, 0.0
    %v168 = vmax.f32 %v155, 0.0
    %v169 = vmax.f32 %v157, 0.0
    %v170 = vmax.f32 %v160, 0.0
    %v171 = vmax.f32 %v162, 0.0
    %v172 = vld [vmem:[%s3] sm:$0xf]
    %v173 = vld [vmem:[%s3 + $0x4] sm:$0xf]
    %v174 = vld [vmem:[%s3 + $0x8] sm:$0xf]
    %v175 = vld [vmem:[%s3 + $0xc] sm:$0xf]
    %v176 = vpack.c.bf16 %v165, %v164
    %v177 = vpack.c.bf16 %v167, %v166
    %v178 = vpack.c.bf16 %v169, %v168
    %v179 = vpack.c.bf16 %v171, %v170
    %v180 = vld [vmem:[%s4] sm:$0xff]
    %v181 = vld [vmem:[%s4 + $0x8] sm:$0xff]
    %v182 = vld [vmem:[%s4 + $0x10] sm:$0xff]
    %v183 = vld [vmem:[%s4 + $0x18] sm:$0xff]
    %185 = vset.pattern.permute.xlu0 0
    %186 = vperm.xlu0 %185, %v180
    %v187 = vpop.permute.xlu0 %186
    %190 = vset.pattern.permute.xlu0 0
    %191 = vperm.xlu0 %190, %v181
    %v192 = vpop.permute.xlu0 %191
    %195 = vset.pattern.permute.xlu0 0
    %196 = vperm.xlu0 %195, %v182
    %v197 = vpop.permute.xlu0 %196
    %200 = vset.pattern.permute.xlu0 0
    %201 = vperm.xlu0 %200, %v183
    %v202 = vpop.permute.xlu0 %201
    %v208 = vunpack.c.l.b16 %v172
    %v209 = vunpack.c.l.b16 %v173
    %v210 = vunpack.c.l.b16 %v174
    %v211 = vunpack.c.l.b16 %v175
    %v212 = vpack.c.b16 %v209, %v208
    %v213 = vpack.c.b16 %v211, %v210
    %vm214 = vcmask 523264
    %v216 = vsel %vm214, %v212, 0
    %v219 = vsel %vm214, %v213, 0
    %221 = vmatpush.bf16.msra.mxu0 0
    %222 = vmatpush.bf16.msra.mxu0 0
    %223 = vmatpush.bf16.msra.mxu0 0
    %224 = vmatpush.bf16.msra.mxu0 0
    %225 = vmatpush.bf16.msra.mxu0 %v179
    %226 = vmatpush.bf16.msra.mxu0 %v178
    %227 = vmatpush.bf16.msra.mxu0 %v177
    %228 = vmatpush.bf16.msra.mxu0 %v176
    %229 = vmatmul.bf16.gmra.mxu0 %v216
    %v230 = vpop.f32.mrf.mxu0
    %v231 = vadd.f32 %v187, %v230
    %v232 = vpop.f32.mrf.mxu0
    %v233 = vadd.f32 %v192, %v232
    %234 = vmatmul.bf16.gmra.mxu0 %v219
    %v235 = vpop.f32.mrf.mxu0
    %v236 = vadd.f32 %v197, %v235
    %v237 = vpop.f32.mrf.mxu0
    %v238 = vadd.f32 %v202, %v237
    %239 = vdwg.mxu0
    %v240 = vmax.f32 %v231, 0.0
    %v241 = vmax.f32 %v233, 0.0
    %v242 = vmax.f32 %v236, 0.0
    %v243 = vmax.f32 %v238, 0.0
    %v244 = vld [vmem:[%s5] sm:$0x1]
    %v245 = vpack.c.bf16 %v241, %v240
    %v246 = vpack.c.bf16 %v243, %v242
    %v247 = vld [vmem:[#allocation2] sm:$0x1]
    %249 = vset.pattern.permute.xlu0 0
    %250 = vperm.xlu0 %249, %v247
    %v251 = vpop.permute.xlu0 %250
    %v253 = vperm.slane %v251, 0
    %v255 = vsel %vm122, %v244, 0
    %257 = vmatpush.bf16.msra.mxu0 0
    %258 = vmatpush.bf16.msra.mxu0 0
    %259 = vmatpush.bf16.msra.mxu0 0
    %260 = vmatpush.bf16.msra.mxu0 0
    %261 = vmatpush.bf16.msra.mxu0 0
    %262 = vmatpush.bf16.msra.mxu0 0
    %263 = vmatpush.bf16.msra.mxu0 %v246
    %264 = vmatpush.bf16.msra.mxu0 %v245
    %265 = vmatmul.bf16.gmra.mxu0 %v255
    %v266 = vpop.f32.mrf.mxu0
    %v267 = vadd.f32 %v253, %v266
    %v268 = vpop.f32.mrf.mxu0
    %269 = vdwg.mxu0
    %vm270 = vcmask 122880
    %271 = vst.msk [vmem:[#allocation3] sm:$0x1] %vm270, %v267
    // Predicated region
    $region30: #{tpu_custom_call.1} parent=1 // pred_check
      _
    $region31: #{tpu_custom_call.1} parent=1 // pred_check_branch
      %273 = sbr.rel (0) target = $region33
    $region32: #{tpu_custom_call.1} parent=1 // pred_region
      %275 = vsyncadd [#allocation4], 0
      %s277 = sshll.u32 [#allocation3], 4
      %s278 = int_to_ptr.vmem [resolvable:$true] %s277
      %s279 = sshll.u32 %s7, 4
      %s280 = int_to_ptr.hbm [resolvable:$true] %s279
      %282 = dma.vmem_to_hbm [thread:$0]  %s278, 16, %s280, [#allocation4]
    $region33: #{tpu_custom_call.1} parent=1 // pred_fallthru
      _
    // Predicated region
    $region34: #{tpu_custom_call.1} parent=1 // pred_check
      _
    $region35: #{tpu_custom_call.1} parent=1 // pred_check_branch
      %284 = sbr.rel (0) target = $region37
    $region36: #{tpu_custom_call.1} parent=1 // pred_region
      %286 = dma.done [#allocation4], 16
    $region37: #{tpu_custom_call.1} parent=1 // pred_fallthru
      _
    %287 = vsyncpa [#allocation4], 1

</llo_original>
